<compile_context>
chip_gen: v5e
topology: v5e:2x2
jax: 0.10.0
libtpu: 0.0.40
codegen_flags: <defaults>
</compile_context>

<pallas_src>
import functools

import jax
import jax.numpy as jnp
from jax import lax
from jax.experimental import pallas as pl
from jax.experimental.pallas import tpu as pltpu

MARGIN = 0.2
LOSS_WEIGHT = 5e-05

_LANES = 128
_MAX_TILE_ROWS = 8192          # 8192 x 128 f32 = 4 MiB per input block
_SMALL_N_THRESHOLD = 1 << 17   # below this, plain jnp beats a kernel launch


def _selective_margin_kernel(pos_ref, neg_ref, has_ref, out_ref, *,
                             total_rows, block_rows, margin):
    """One grid step: masked clamp + sublane-reduced partial sums.

    out_ref block is (1, 2, 128): row 0 = partial sum(margin_diff * has),
    row 1 = partial sum(has); both still spread across the 128 lanes (the
    cross-lane reduce is deferred to the wrapper epilogue).
    """
    i = pl.program_id(0)

    # Row-level validity mask: only whole rows past `total_rows` (the partial
    # last grid block) can hold garbage -- the ragged <=127-element tail never
    # reaches the kernel.  No element-level flat index -> no int32 overflow.
    r = lax.broadcasted_iota(jnp.int32, (block_rows, _LANES), 0)
    valid = (i * block_rows + r) < total_rows

    pos = pos_ref[...].astype(jnp.float32)
    neg = neg_ref[...].astype(jnp.float32)
    has = has_ref[...].astype(jnp.float32)

    margin_diff = jnp.clip(pos - neg + margin, 0.0, 1.0e6)
    # jnp.where (not a plain multiply) so garbage in out-of-bounds tail rows
    # (possibly NaN/Inf) can never leak into the sums.
    w = jnp.where(valid, margin_diff * has, 0.0)
    h = jnp.where(valid, has, 0.0)

    # Sublane-only (VPU-cheap) reduction per block.
    out_ref[0, 0:1, :] = jnp.sum(w, axis=0, keepdims=True)
    out_ref[0, 1:2, :] = jnp.sum(h, axis=0, keepdims=True)


def selective_margin_loss(pos_samples, neg_samples, has_sample,
                          margin=MARGIN, loss_weight=LOSS_WEIGHT,
                          *, small_n_threshold=_SMALL_N_THRESHOLD,
                          max_tile_rows=_MAX_TILE_ROWS):
    pos = jnp.asarray(pos_samples).reshape(-1)
    neg = jnp.asarray(neg_samples).reshape(-1)
    has = jnp.asarray(has_sample).reshape(-1)
    n = pos.size
    assert neg.size == n and has.size == n

    def _jnp_sums(p, q, h):
        p = p.astype(jnp.float32)
        q = q.astype(jnp.float32)
        h = h.astype(jnp.float32)
        md = jnp.clip(p - q + margin, 0.0, 1.0e6)
        return jnp.sum(md * h), jnp.sum(h)

    def _finish(wsum, hsum):
        num_sample = jnp.maximum(hsum, 1.0)
        return jnp.float32(loss_weight) * (wsum / num_sample)

    n_rows = n // _LANES            # full 128-wide rows
    n_aligned = n_rows * _LANES

    # Tiny-N fast path: launch overhead would dominate; let XLA fuse it.
    if n < small_n_threshold or n_rows == 0:
        return _finish(*_jnp_sums(pos, neg, has))

    # ---- Pallas streaming path over the 128-aligned prefix ----------------
    pos2 = pos[:n_aligned].reshape(n_rows, _LANES)
    neg2 = neg[:n_aligned].reshape(n_rows, _LANES)
    has2 = has[:n_aligned].reshape(n_rows, _LANES)

    block_rows = min(n_rows, max_tile_rows)
    if block_rows < n_rows:
        # Partial-array blocks must be a multiple of 32 sublanes so any input
        # dtype (f32 / bf16 / int8 / bool) satisfies the TPU tiling rules.
        block_rows = max(32, (block_rows // 32) * 32)
    num_blocks = pl.cdiv(n_rows, block_rows)

    kernel = functools.partial(_selective_margin_kernel,
                               total_rows=n_rows, block_rows=block_rows,
                               margin=margin)

    in_bytes = sum(int(x.size) * x.dtype.itemsize for x in (pos2, neg2, has2))
    block_in_bytes = sum(block_rows * _LANES * x.dtype.itemsize
                         for x in (pos2, neg2, has2))
    out_bytes = int(num_blocks) * 2 * _LANES * 4
    # Double-buffered input blocks + tiny outputs + headroom.  Stays inside
    # v7x's 64 MiB physical VMEM while explicitly raising the 16/32 MiB
    # scoped defaults on v5e/v6e when large tiles are in play.
    vmem_limit = int(min(40 << 20, max(8 << 20, 2 * block_in_bytes + (2 << 20))))

    partials = pl.pallas_call(
        kernel,
        out_shape=jax.ShapeDtypeStruct((num_blocks, 2, _LANES), jnp.float32),
        grid=(num_blocks,),
        in_specs=[
            pl.BlockSpec((block_rows, _LANES), lambda i: (i, 0)),
            pl.BlockSpec((block_rows, _LANES), lambda i: (i, 0)),
            pl.BlockSpec((block_rows, _LANES), lambda i: (i, 0)),
        ],
        out_specs=pl.BlockSpec((1, 2, _LANES), lambda i: (i, 0, 0)),
        compiler_params=pltpu.CompilerParams(
            dimension_semantics=("parallel",),
            vmem_limit_bytes=vmem_limit,
        ),
        cost_estimate=pl.CostEstimate(
            flops=8 * n_aligned, transcendentals=0,
            bytes_accessed=in_bytes + out_bytes),
    )(pos2, neg2, has2)

    # Tiny epilogue: cross-block + cross-lane reduce (+ ragged tail).
    wsum = jnp.sum(partials[:, 0, :])
    hsum = jnp.sum(partials[:, 1, :])
    tail = n - n_aligned
    if tail:
        tw, th = _jnp_sums(pos[n_aligned:], neg[n_aligned:], has[n_aligned:])
        wsum = wsum + tw
        hsum = hsum + th
    return _finish(wsum, hsum)


def _reference(pos, neg, has, margin=MARGIN, loss_weight=LOSS_WEIGHT):
    pos = pos.astype(jnp.float32)
    neg = neg.astype(jnp.float32)
    has = has.astype(jnp.float32)
    md = jnp.clip(pos - neg + margin, 0.0, 1.0e6)
    num = jnp.maximum(jnp.sum(has), 1.0)
    return loss_weight * (jnp.sum(md * has) / num)


if __name__ == "__main__":
    key = jax.random.PRNGKey(0)

    def make(n, seed_key):
        k1, k2, k3 = jax.random.split(seed_key, 3)
        pos = jax.random.normal(k1, (n,), dtype=jnp.float32)
        neg = jax.random.normal(k2, (n,), dtype=jnp.float32)
        # has_sample stays narrow (int8) through the kernel's DMA.
        has = jax.random.bernoulli(k3, 0.7, (n,)).astype(jnp.int8)
        return pos, neg, has

    # Force the Pallas path even at small demo sizes.
    kernel_fn = jax.jit(functools.partial(selective_margin_loss,
                                          small_n_threshold=0))
    # Same, with tiny tiles to exercise the multi-block / partial-last-block
    # masking path at a small size.
    kernel_fn_tiled = jax.jit(functools.partial(selective_margin_loss,
                                                small_n_threshold=0,
                                                max_tile_rows=32))
    # Default behaviour: small batches take the jnp fast path.
    default_fn = jax.jit(selective_margin_loss)

    ks = jax.random.split(key, 3)

    # (A) 128-aligned small batch, single grid block.
    pa, na, ha = make(256, ks[0])
    out_a = jax.block_until_ready(kernel_fn(pa, na, ha))
    ref_a = _reference(pa, na, ha)
    assert jnp.allclose(out_a, ref_a, rtol=1e-5, atol=1e-8), (out_a, ref_a)

    # (B) Misaligned batch: 3 grid blocks (partial last) + ragged-tail epilogue.
    pb, nb, hb = make(70 * 128 + 17, ks[1])
    out_b = jax.block_until_ready(kernel_fn_tiled(pb, nb, hb))
    ref_b = _reference(pb, nb, hb)
    assert jnp.allclose(out_b, ref_b, rtol=1e-5, atol=1e-8), (out_b, ref_b)

    # (C) Default path: small batch -> plain jnp fast path.
    pc, nc, hc = make(300, ks[2])
    out_c = jax.block_until_ready(default_fn(pc, nc, hc))
    ref_c = _reference(pc, nc, hc)
    assert jnp.allclose(out_c, ref_c, rtol=1e-5, atol=1e-8), (out_c, ref_c)

    print("KERNEL_OK")
</pallas_src>

<mosaic_0001>
module attributes {stable_mosaic.version = 11 : i64} {
  func.func @_selective_margin_kernel(%arg0: i32, %arg1: memref<2x128xf32, #tpu.memory_space<vmem>>, %arg2: memref<2x128xf32, #tpu.memory_space<vmem>>, %arg3: memref<2x128xi8, #tpu.memory_space<vmem>>, %arg4: memref<1x2x128xf32, #tpu.memory_space<vmem>>) attributes {dimension_semantics = [#tpu.dimension_semantics<parallel>], iteration_bounds = array<i64: 1>, scalar_prefetch = 0 : i64, scratch_operands = 0 : i64, tpu.core_type = #tpu.core_type<tc>, window_params = [{transform_indices = @transform_0, window_bounds = array<i64: 2, 128>}, {transform_indices = @transform_1, window_bounds = array<i64: 2, 128>}, {transform_indices = @transform_2, window_bounds = array<i64: 2, 128>}, {transform_indices = @transform_3, window_bounds = array<i64: 1, 2, 128>}]} {
    %0 = tpu.iota {dimensions = array<i32: 0>} : vector<2x128xi32>
    %c2_i32 = arith.constant 2 : i32
    %1 = arith.muli %arg0, %c2_i32 : i32
    %2 = vector.broadcast %1 : i32 to vector<2x128xi32>
    %3 = arith.addi %2, %0 : vector<2x128xi32>
    %c2_i32_0 = arith.constant 2 : i32
    %4 = vector.broadcast %c2_i32_0 : i32 to vector<2x128xi32>
    %5 = arith.cmpi slt, %3, %4 : vector<2x128xi32>
    %c0 = arith.constant 0 : index
    %c0_1 = arith.constant 0 : index
    %6 = vector.load %arg1[%c0, %c0_1] : memref<2x128xf32, #tpu.memory_space<vmem>>, vector<2x128xf32>
    %c0_2 = arith.constant 0 : index
    %c0_3 = arith.constant 0 : index
    %7 = vector.load %arg2[%c0_2, %c0_3] : memref<2x128xf32, #tpu.memory_space<vmem>>, vector<2x128xf32>
    %c0_4 = arith.constant 0 : index
    %c0_5 = arith.constant 0 : index
    %8 = vector.load %arg3[%c0_4, %c0_5] : memref<2x128xi8, #tpu.memory_space<vmem>>, vector<2x128xi8>
    %9 = arith.sitofp %8 : vector<2x128xi8> to vector<2x128xf32>
    %10 = arith.subf %6, %7 : vector<2x128xf32>
    %cst = arith.constant 2.000000e-01 : f32
    %11 = vector.broadcast %cst : f32 to vector<2x128xf32>
    %12 = arith.addf %10, %11 : vector<2x128xf32>
    %cst_6 = arith.constant 0.000000e+00 : f32
    %cst_7 = arith.constant 1.000000e+06 : f32
    %13 = vector.broadcast %cst_6 : f32 to vector<2x128xf32>
    %14 = arith.maximumf %13, %12 : vector<2x128xf32>
    %15 = vector.broadcast %cst_7 : f32 to vector<2x128xf32>
    %16 = arith.minimumf %15, %14 : vector<2x128xf32>
    %17 = arith.mulf %16, %9 : vector<2x128xf32>
    %cst_8 = arith.constant 0.000000e+00 : f32
    %18 = vector.broadcast %cst_8 : f32 to vector<2x128xf32>
    %19 = arith.select %5, %17, %18 : vector<2x128xi1>, vector<2x128xf32>
    %cst_9 = arith.constant 0.000000e+00 : f32
    %20 = vector.broadcast %cst_9 : f32 to vector<2x128xf32>
    %21 = arith.select %5, %9, %20 : vector<2x128xi1>, vector<2x128xf32>
    %cst_10 = arith.constant dense<0.000000e+00> : vector<128xf32>
    %22 = vector.multi_reduction <add>, %19, %cst_10 [0] : vector<2x128xf32> to vector<128xf32>
    %23 = vector.shape_cast %22 : vector<128xf32> to vector<1x128xf32>
    %c0_11 = arith.constant 0 : index
    %c0_12 = arith.constant 0 : index
    %c0_13 = arith.constant 0 : index
    %24 = vector.load %arg4[%c0_11, %c0_12, %c0_13] : memref<1x2x128xf32, #tpu.memory_space<vmem>>, vector<1x1x128xf32>
    %25 = vector.shape_cast %24 : vector<1x1x128xf32> to vector<1x128xf32>
    %26 = vector.shape_cast %23 : vector<1x128xf32> to vector<1x1x128xf32>
    tpu.vector_store %arg4[%c0_11, %c0_12, %c0_13], %26 {strides = array<i32>} : memref<1x2x128xf32, #tpu.memory_space<vmem>>, vector<1x1x128xf32>,
    %cst_14 = arith.constant dense<0.000000e+00> : vector<128xf32>
    %27 = vector.multi_reduction <add>, %21, %cst_14 [0] : vector<2x128xf32> to vector<128xf32>
    %28 = vector.shape_cast %27 : vector<128xf32> to vector<1x128xf32>
    %c0_15 = arith.constant 0 : index
    %c1 = arith.constant 1 : index
    %c0_16 = arith.constant 0 : index
    %29 = vector.load %arg4[%c0_15, %c1, %c0_16] : memref<1x2x128xf32, #tpu.memory_space<vmem>>, vector<1x1x128xf32>
    %30 = vector.shape_cast %29 : vector<1x1x128xf32> to vector<1x128xf32>
    %31 = vector.shape_cast %28 : vector<1x128xf32> to vector<1x1x128xf32>
    tpu.vector_store %arg4[%c0_15, %c1, %c0_16], %31 {strides = array<i32>} : memref<1x2x128xf32, #tpu.memory_space<vmem>>, vector<1x1x128xf32>,
    return
  }
  func.func @transform_0(%arg0: i32) -> (i32, i32) {
    %c0_i32 = arith.constant 0 : i32
    %c0_i32_0 = arith.constant 0 : i32
    return %arg0, %c0_i32 : i32, i32
  }
  func.func @transform_1(%arg0: i32) -> (i32, i32) {
    %c0_i32 = arith.constant 0 : i32
    %c0_i32_0 = arith.constant 0 : i32
    return %arg0, %c0_i32 : i32, i32
  }
  func.func @transform_2(%arg0: i32) -> (i32, i32) {
    %c0_i32 = arith.constant 0 : i32
    %c0_i32_0 = arith.constant 0 : i32
    return %arg0, %c0_i32 : i32, i32
  }
  func.func @transform_3(%arg0: i32) -> (i32, i32, i32) {
    %c0_i32 = arith.constant 0 : i32
    %c0_i32_0 = arith.constant 0 : i32
    %c0_i32_1 = arith.constant 0 : i32
    return %arg0, %c0_i32, %c0_i32_0 : i32, i32, i32
  }
}

</mosaic_0001>

<llo_original>
// kernel: selective_margin_loss.1
$region0: #{selective_margin_loss.1}
  #allocation0 [shape = 'u32[]', space=smem, size = 0x4, offset = 0x4, fixed_abs, tag = 'smem constant byte address 0x4 - core index']
  #allocation1 [shape = 'u32[72,128]{1,0:T(1,128)}', space=vmem, size = 0x9000, scoped, tag = 'internal scratch']
  %s0 = inlined_call_operand.vmem [shape: f32[2,128], index: 0, kind: input, shape index: {}]
  %s1 = inlined_call_operand.hbm [shape: f32[2,128], index: 1, kind: input, shape index: {}]
  %s2 = inlined_call_operand.vmem [shape: s8[2,128], index: 2, kind: input, shape index: {}]
  %s3 = inlined_call_operand.vmem [shape: f32[1,2,128], index: 3, kind: output, shape index: {}]
  %s4 = sld [smem:[#allocation0]]
  $region26: #{selective_margin_loss.1} parent=0
    _
  %s6 = ssub.s32 1, %s4
  %s7 = scalar_select 0, %s6, %s4
  $region1: #{selective_margin_loss.1} parent=0
    #allocation2 [shape = 'u8[1024]{0}', space=vmem, size = 0x400, scoped, tag = 'input window, operand 1, single buffered']
    #allocation3 [shape = 's32[1]{0}', space=sflag, size = 0x4, scoped, tag = 'scoped memory for selective_margin_loss.1']
    %8 = vsyncpa [#allocation3], 0
    // Predicated region
    $region2: #{selective_margin_loss.1} parent=1 // pred_check
      _
    $region3: #{selective_margin_loss.1} parent=1 // pred_check_branch
      %10 = sbr.rel (0) target = $region5
    $region4: #{selective_margin_loss.1} parent=1 // pred_region
      _
    $region5: #{selective_margin_loss.1} parent=1 // pred_fallthru
      _
    // Predicated region
    $region6: #{selective_margin_loss.1} parent=1 // pred_check
      _
    $region7: #{selective_margin_loss.1} parent=1 // pred_check_branch
      %12 = sbr.rel (0) target = $region9
    $region8: #{selective_margin_loss.1} parent=1 // pred_region
      %14 = vsyncadd [#allocation3], 0
      %s16 = sshll.u32 %s1, 4
      %s17 = int_to_ptr.hbm [resolvable:$true] %s16
      %s18 = sshll.u32 [#allocation2], 4
      %s19 = int_to_ptr.vmem [resolvable:$true] %s18
      %21 = dma.hbm_to_vmem [thread:$0]  %s17, 32, %s19, [#allocation3]
    $region9: #{selective_margin_loss.1} parent=1 // pred_fallthru
      _
    // Predicated region
    $region10: #{selective_margin_loss.1} parent=1 // pred_check
      _
    $region11: #{selective_margin_loss.1} parent=1 // pred_check_branch
      %23 = sbr.rel (0) target = $region13
    $region12: #{selective_margin_loss.1} parent=1 // pred_region
      _
    $region13: #{selective_margin_loss.1} parent=1 // pred_fallthru
      _
    // Predicated region
    $region14: #{selective_margin_loss.1} parent=1 // pred_check
      _
    $region15: #{selective_margin_loss.1} parent=1 // pred_check_branch
      %25 = sbr.rel (0) target = $region17
    $region16: #{selective_margin_loss.1} parent=1 // pred_region
      %27 = dma.done [#allocation3], 32
    $region17: #{selective_margin_loss.1} parent=1 // pred_fallthru
      _
    %v28 = vlaneseq
    %v29 = vshrl.u32 %v28, 7
    %s30 = smul.u32 0, 2
    %v31 = vstv %s30
    %v32 = vadd.s32 %v31, %v29
    %vm33 = vcmp.lt.s32.totalorder %v32, 2
    %v34 = vld [vmem:[%s0] sm:$0x3]
    %v35 = vld [vmem:[#allocation2] sm:$0x3]
    %v36 = vld [vmem:[%s2] sm:$0x1]
    %v37 = vunpack.c.0.s8 %v36
    %v38 = vcvt.s32.f32 %v37
    %v39 = vsub.f32 %v34, %v35
    %v40 = vadd.f32 %v39, 0.2
    %v41 = vmax.f32 %v40, 0.0
    %v42 = vmin.f32 %v41, 1000000.0
    %v43 = vmul.f32 %v42, %v38
    %v44 = vsel %vm33, %v43, 0.0
    %v45 = vsel %vm33, %v38, 0.0
    %vm46 = vcmask 1041408
    %v47 = vsel %vm46, %v44, 0.0
    %v48 = vrot.slane %v47, 4
    %v49 = vadd.f32 %v47, %v48
    %v50 = vrot.slane %v49, 2
    %v51 = vadd.f32 %v49, %v50
    %v52 = vrot.slane %v51, 1
    %v53 = vadd.f32 %v51, %v52
    %54 = vst [vmem:[%s3] sm:$0x1] %v53
    %v55 = vsel %vm46, %v45, 0.0
    %v56 = vrot.slane %v55, 4
    %v57 = vadd.f32 %v55, %v56
    %v58 = vrot.slane %v57, 2
    %v59 = vadd.f32 %v57, %v58
    %v60 = vrot.slane %v59, 1
    %v61 = vadd.f32 %v59, %v60
    %62 = vst [vmem:[%s3 + $0x1] sm:$0x1] %v61
    // Predicated region
    $region18: #{selective_margin_loss.1} parent=1 // pred_check
      _
    $region19: #{selective_margin_loss.1} parent=1 // pred_check_branch
      %64 = sbr.rel (0) target = $region21
    $region20: #{selective_margin_loss.1} parent=1 // pred_region
      _
    $region21: #{selective_margin_loss.1} parent=1 // pred_fallthru
      _
    // Predicated region
    $region22: #{selective_margin_loss.1} parent=1 // pred_check
      _
    $region23: #{selective_margin_loss.1} parent=1 // pred_check_branch
      %66 = sbr.rel (0) target = $region25
    $region24: #{selective_margin_loss.1} parent=1 // pred_region
      _
    $region25: #{selective_margin_loss.1} parent=1 // pred_fallthru
      _
    %67 = vsyncpa [#allocation3], 1

</llo_original>
